<compile_context>
chip_gen: v7x
topology: tpu7x:2x2x1
jax: 0.10.0
libtpu: 0.0.40
codegen_flags: <defaults>
</compile_context>

<pallas_src>
from functools import partial

import jax
import jax.numpy as jnp
from jax.experimental import pallas as pl
from jax.experimental.pallas import tpu as pltpu


def _cse_kernel(x_ref, w1_ref, b1_ref, w2_ref, b2_ref, o_ref, acc_ref,
                *, ts, s_total, need_mask):
    # x_ref : (TN, C, TS)   w1: (C, Ch)  b1: (1, Ch)  w2: (Ch, C)  b2: (1, C)
    # o_ref : (1, TN, C)    acc_ref: (TN, C) f32 scratch (persists over S axis)
    s = pl.program_id(1)

    @pl.when(s == 0)
    def _():
        acc_ref[...] = jnp.zeros_like(acc_ref)

    # Streaming phase: raw channel sums in f32 (1/S is folded into w1 on host).
    x = x_ref[...].astype(jnp.float32)
    if need_mask:
        # Ragged last S tile: zero out lanes past the true spatial extent.
        lane = jax.lax.broadcasted_iota(jnp.int32, x.shape, 2)
        x = jnp.where(s * ts + lane < s_total, x, 0.0)
    acc_ref[...] += jnp.sum(x, axis=-1)

    # Finalize phase: excitation MLP + sigmoid, once per batch block.
    @pl.when(s == pl.num_programs(1) - 1)
    def _():
        pooled = acc_ref[...]                                            # (TN, C)
        h = jnp.dot(pooled, w1_ref[...],
                    preferred_element_type=jnp.float32) + b1_ref[...]    # (TN, Ch)
        h = jnp.maximum(h, 0.0)
        z = jnp.dot(h, w2_ref[...],
                    preferred_element_type=jnp.float32) + b2_ref[...]    # (TN, C)
        o_ref[0] = jax.nn.sigmoid(z).astype(o_ref.dtype)


def _vmem_budget():
    """Generation-aware (per-buffer streaming budget, vmem_limit_bytes)."""
    vmem_bytes = 64 * 1024 * 1024                      # conservative (v7x-like)
    try:
        info = pltpu.get_tpu_info()
        vmem_bytes = int(getattr(info, "vmem_capacity_bytes", vmem_bytes))
    except Exception:
        pass
    if vmem_bytes >= 100 * 1024 * 1024:                # v5e / v6e: 128 MiB VMEM
        return 44 * 1024 * 1024, 100 * 1024 * 1024
    return 20 * 1024 * 1024, 56 * 1024 * 1024          # v7x: 64 MiB VMEM


def _choose_tiles(N, C, S, itemsize, per_buffer_budget):
    """Pick (TN, TS).

    TN divides N exactly (no batch padding), preferring a batch-grid extent
    >= 2 so both v7x TensorCores get work.  TN shrinks before TS so the
    streaming tile keeps long contiguous DMA runs; TS is a multiple of 128
    (ragged tail masked in-kernel) or equals S exactly when it fits.
    """
    divisors = [t for t in (8, 4, 2, 1) if t <= N and N % t == 0]
    pref = [t for t in divisors if N // t >= 2] or divisors
    s128 = ((S + 127) // 128) * 128
    min_ts = min(512, s128)

    tn, max_ts = None, 0
    for cand in pref:
        cand_ts = (per_buffer_budget // max(cand * C * itemsize, 1)) // 128 * 128
        if cand_ts >= min_ts:
            tn, max_ts = cand, cand_ts
            break
    if tn is None:
        # Very large C: take the smallest TN and at least one 128-lane tile.
        tn = pref[-1]
        max_ts = max(128, (per_buffer_budget // max(tn * C * itemsize, 1)) // 128 * 128)

    if max_ts >= S:
        ts = S          # single S tile; lane dim == full array dim (always legal)
    else:
        ts = max_ts     # multiple of 128; ragged last tile masked in-kernel
    return tn, ts


def cse_forward(x, w1f, b1f, w2f, b2f, *, per_buffer_budget=None):
    """x: (N, C, D, H, W) -> sigmoid gate of shape (N, C, 1, 1, 1) (float32).

    w1f: (C, Ch) BN-folded conv1 weight (right-multiply layout), b1f: (Ch,)
    w2f: (Ch, C) BN-folded conv2 weight, b2f: (C,)
    x may be float32 or bfloat16; accumulation is promoted to f32 in-kernel.
    """
    N, C, D, H, W = x.shape
    Ch = w1f.shape[1]
    S = D * H * W
    itemsize = jnp.dtype(x.dtype).itemsize

    budget, vmem_limit = _vmem_budget()
    if per_buffer_budget is not None:        # test hook / manual override
        budget = per_buffer_budget
    TN, TS = _choose_tiles(N, C, S, itemsize, budget)
    G = N // TN
    s_tiles = pl.cdiv(S, TS)
    need_mask = (S % TS) != 0

    # No host-side padding: just a metadata reshape of the NCDHW tensor.
    x_flat = x.reshape(N, C, S)

    # Fold the 1/S average-pool scale into the first conv weight so the hot
    # loop is pure accumulation.
    w1s = (w1f / jnp.float32(S)).astype(jnp.float32)
    b1_2d = b1f.reshape(1, Ch).astype(jnp.float32)
    w2_2d = w2f.astype(jnp.float32)
    b2_2d = b2f.reshape(1, C).astype(jnp.float32)

    kernel = partial(_cse_kernel, ts=TS, s_total=S, need_mask=need_mask)

    cost = pl.CostEstimate(
        flops=N * C * S + 4 * N * C * Ch,
        transcendentals=N * C,
        bytes_accessed=N * C * S * itemsize + N * C * 4
        + (C * Ch + Ch + Ch * C + C) * 4,
    )

    out = pl.pallas_call(
        kernel,
        out_shape=jax.ShapeDtypeStruct((G, TN, C), jnp.float32),
        grid_spec=pltpu.PrefetchScalarGridSpec(
            num_scalar_prefetch=0,
            grid=(G, s_tiles),
            in_specs=[
                pl.BlockSpec((TN, C, TS), lambda n, s: (n, 0, s)),
                pl.BlockSpec((C, Ch), lambda n, s: (0, 0)),
                pl.BlockSpec((1, Ch), lambda n, s: (0, 0)),
                pl.BlockSpec((Ch, C), lambda n, s: (0, 0)),
                pl.BlockSpec((1, C), lambda n, s: (0, 0)),
            ],
            out_specs=pl.BlockSpec((1, TN, C), lambda n, s: (n, 0, 0)),
            scratch_shapes=[pltpu.VMEM((TN, C), jnp.float32)],
        ),
        compiler_params=pltpu.CompilerParams(
            dimension_semantics=("parallel", "arbitrary"),
            vmem_limit_bytes=vmem_limit,
        ),
        cost_estimate=cost,
    )(x_flat, w1s, b1_2d, w2_2d, b2_2d)

    return out.reshape(N, C, 1, 1, 1)


def _fold_conv_bn(w, b, gamma, beta, mean, var, eps=1e-5):
    """Fold Conv(1x1x1) weight (Cout, Cin) + bias with inference-mode BN.

    Returns w_folded transposed to (Cin, Cout) for right-multiplication and
    b_folded of shape (Cout,).
    """
    s = gamma / jnp.sqrt(var + eps)                 # (Cout,)
    w_f = w * s[:, None]                            # (Cout, Cin)
    b_f = (b - mean) * s + beta                     # (Cout,)
    return w_f.T, b_f                               # (Cin, Cout), (Cout,)


def _reference(x, w1, b1, bn1, w2, b2, bn2):
    """Pure-JAX reference matching the PyTorch forward (BN in eval mode)."""
    g1, be1, m1, v1 = bn1
    g2, be2, m2, v2 = bn2
    pooled = jnp.mean(x.astype(jnp.float32), axis=(2, 3, 4))    # (N, C)
    h = pooled @ w1.T + b1
    h = g1 * (h - m1) / jnp.sqrt(v1 + 1e-5) + be1
    h = jnp.maximum(h, 0.0)
    z = h @ w2.T + b2
    z = g2 * (z - m2) / jnp.sqrt(v2 + 1e-5) + be2
    return jax.nn.sigmoid(z)[:, :, None, None, None]


if __name__ == "__main__":
    key = jax.random.PRNGKey(0)
    N, C = 2, 8
    Ch = C // 2

    keys = jax.random.split(key, 13)

    # conv1 / BN1 params
    w1 = jax.random.normal(keys[1], (Ch, C), dtype=jnp.float32) * 0.2
    b1 = jax.random.normal(keys[2], (Ch,), dtype=jnp.float32) * 0.1
    g1 = 1.0 + 0.1 * jax.random.normal(keys[3], (Ch,), dtype=jnp.float32)
    be1 = 0.1 * jax.random.normal(keys[4], (Ch,), dtype=jnp.float32)
    m1 = 0.1 * jax.random.normal(keys[5], (Ch,), dtype=jnp.float32)
    v1 = 1.0 + 0.1 * jnp.abs(jax.random.normal(keys[6], (Ch,), dtype=jnp.float32))

    # conv2 / BN2 params
    w2 = jax.random.normal(keys[7], (C, Ch), dtype=jnp.float32) * 0.2
    b2 = jax.random.normal(keys[8], (C,), dtype=jnp.float32) * 0.1
    g2 = 1.0 + 0.1 * jax.random.normal(keys[9], (C,), dtype=jnp.float32)
    be2 = 0.1 * jax.random.normal(keys[10], (C,), dtype=jnp.float32)
    m2 = 0.1 * jax.random.normal(keys[11], (C,), dtype=jnp.float32)
    v2 = 1.0 + 0.1 * jnp.abs(jax.random.normal(keys[12], (C,), dtype=jnp.float32))

    # Fold BN into the 1x1x1 convs (host-side glue).
    w1f, b1f = _fold_conv_bn(w1, b1, g1, be1, m1, v1)   # (C, Ch), (Ch,)
    w2f, b2f = _fold_conv_bn(w2, b2, g2, be2, m2, v2)   # (Ch, C), (C,)

    # --- Test 1: standard path (single S tile, no masking, grid extent 2). ---
    D1, H1, W1 = 8, 8, 8
    x1 = jax.random.normal(keys[0], (N, C, D1, H1, W1), dtype=jnp.float32)
    out1 = jax.block_until_ready(cse_forward(x1, w1f, b1f, w2f, b2f))
    ref1 = _reference(x1, w1, b1, (g1, be1, m1, v1), w2, b2, (g2, be2, m2, v2))
    assert out1.shape == (N, C, 1, 1, 1)
    assert jnp.allclose(out1, ref1, atol=1e-5, rtol=1e-5), (
        f"max abs diff {jnp.max(jnp.abs(out1 - ref1))}")

    # --- Test 2: force multi-tile S with a ragged last tile (in-kernel mask
    # path + accumulator across S steps) via a tiny per-buffer budget. ---
    D2, H2, W2 = 4, 6, 10   # S = 240, not a multiple of 128
    x2 = jax.random.normal(keys[0], (N, C, D2, H2, W2), dtype=jnp.float32)
    out2 = jax.block_until_ready(
        cse_forward(x2, w1f, b1f, w2f, b2f, per_buffer_budget=4 * 1024))
    ref2 = _reference(x2, w1, b1, (g1, be1, m1, v1), w2, b2, (g2, be2, m2, v2))
    assert out2.shape == (N, C, 1, 1, 1)
    assert jnp.allclose(out2, ref2, atol=1e-5, rtol=1e-5), (
        f"max abs diff {jnp.max(jnp.abs(out2 - ref2))}")

    print("KERNEL_OK")
</pallas_src>

<mosaic_0001>
module attributes {stable_mosaic.version = 11 : i64} {
  func.func @_cse_kernel(%arg0: i32, %arg1: i32, %arg2: memref<1x8x512xf32, #tpu.memory_space<vmem>>, %arg3: memref<8x4xf32, #tpu.memory_space<vmem>>, %arg4: memref<1x4xf32, #tpu.memory_space<vmem>>, %arg5: memref<4x8xf32, #tpu.memory_space<vmem>>, %arg6: memref<1x8xf32, #tpu.memory_space<vmem>>, %arg7: memref<1x1x8xf32, #tpu.memory_space<vmem>>, %arg8: memref<1x8xf32, #tpu.memory_space<vmem>>) attributes {dimension_semantics = [#tpu.dimension_semantics<parallel>, #tpu.dimension_semantics<arbitrary>], iteration_bounds = array<i64: 2, 1>, scalar_prefetch = 0 : i64, scratch_operands = 1 : i64, tpu.core_type = #tpu.core_type<tc>, window_params = [{transform_indices = @transform_0, window_bounds = array<i64: 1, 8, 512>}, {pipeline_mode = #tpu.pipeline_mode<synchronous>, transform_indices = @transform_1, window_bounds = array<i64: 8, 4>}, {pipeline_mode = #tpu.pipeline_mode<synchronous>, transform_indices = @transform_2, window_bounds = array<i64: 1, 4>}, {pipeline_mode = #tpu.pipeline_mode<synchronous>, transform_indices = @transform_3, window_bounds = array<i64: 4, 8>}, {pipeline_mode = #tpu.pipeline_mode<synchronous>, transform_indices = @transform_4, window_bounds = array<i64: 1, 8>}, {transform_indices = @transform_5, window_bounds = array<i64: 1, 1, 8>}]} {
    %c0_i32 = arith.constant 0 : i32
    %0 = arith.cmpi eq, %arg1, %c0_i32 : i32
    %1 = arith.extui %0 : i1 to i32
    %c0_i32_0 = arith.constant 0 : i32
    %2 = arith.cmpi ne, %1, %c0_i32_0 : i32
    scf.if %2 {
      %cst_9 = arith.constant 0.000000e+00 : f32
      %11 = vector.broadcast %cst_9 : f32 to vector<1x8xf32>
      %c0_10 = arith.constant 0 : index
      %c0_11 = arith.constant 0 : index
      %12 = vector.load %arg8[%c0_10, %c0_11] : memref<1x8xf32, #tpu.memory_space<vmem>>, vector<1x8xf32>
      tpu.vector_store %arg8[%c0_10, %c0_11], %11 {strides = array<i32>} : memref<1x8xf32, #tpu.memory_space<vmem>>, vector<1x8xf32>,
    } else {
    }
    %c0 = arith.constant 0 : index
    %c0_1 = arith.constant 0 : index
    %c0_2 = arith.constant 0 : index
    %3 = vector.load %arg2[%c0, %c0_1, %c0_2] : memref<1x8x512xf32, #tpu.memory_space<vmem>>, vector<1x8x512xf32>
    %c0_3 = arith.constant 0 : index
    %c0_4 = arith.constant 0 : index
    %4 = vector.load %arg8[%c0_3, %c0_4] : memref<1x8xf32, #tpu.memory_space<vmem>>, vector<1x8xf32>
    %cst = arith.constant dense<0.000000e+00> : vector<1x8xf32>
    %5 = vector.multi_reduction <add>, %3, %cst [2] : vector<1x8x512xf32> to vector<1x8xf32>
    %6 = arith.addf %4, %5 : vector<1x8xf32>
    %c0_5 = arith.constant 0 : index
    %c0_6 = arith.constant 0 : index
    %7 = vector.load %arg8[%c0_5, %c0_6] : memref<1x8xf32, #tpu.memory_space<vmem>>, vector<1x8xf32>
    tpu.vector_store %arg8[%c0_5, %c0_6], %6 {strides = array<i32>} : memref<1x8xf32, #tpu.memory_space<vmem>>, vector<1x8xf32>,
    %c0_i32_7 = arith.constant 0 : i32
    %8 = arith.cmpi eq, %arg1, %c0_i32_7 : i32
    %9 = arith.extui %8 : i1 to i32
    %c0_i32_8 = arith.constant 0 : i32
    %10 = arith.cmpi ne, %9, %c0_i32_8 : i32
    scf.if %10 {
      %c0_9 = arith.constant 0 : index
      %c0_10 = arith.constant 0 : index
      %11 = vector.load %arg8[%c0_9, %c0_10] : memref<1x8xf32, #tpu.memory_space<vmem>>, vector<1x8xf32>
      %c0_11 = arith.constant 0 : index
      %c0_12 = arith.constant 0 : index
      %12 = vector.load %arg3[%c0_11, %c0_12] : memref<8x4xf32, #tpu.memory_space<vmem>>, vector<8x4xf32>
      %cst_13 = arith.constant dense<0.000000e+00> : vector<1x4xf32>
      %13 = tpu.matmul %11, %12, %cst_13 {dimension_numbers = #tpu.dot_dimension_numbers<[1], [0], [0], [1], [0, 0, 1, 1], [], []>} : vector<1x8xf32>, vector<8x4xf32>, vector<1x4xf32> -> vector<1x4xf32>
      %c0_14 = arith.constant 0 : index
      %c0_15 = arith.constant 0 : index
      %14 = vector.load %arg4[%c0_14, %c0_15] : memref<1x4xf32, #tpu.memory_space<vmem>>, vector<1x4xf32>
      %15 = arith.addf %13, %14 : vector<1x4xf32>
      %cst_16 = arith.constant 0.000000e+00 : f32
      %16 = vector.broadcast %cst_16 : f32 to vector<1x4xf32>
      %17 = arith.maximumf %15, %16 : vector<1x4xf32>
      %c0_17 = arith.constant 0 : index
      %c0_18 = arith.constant 0 : index
      %18 = vector.load %arg5[%c0_17, %c0_18] : memref<4x8xf32, #tpu.memory_space<vmem>>, vector<4x8xf32>
      %cst_19 = arith.constant dense<0.000000e+00> : vector<1x8xf32>
      %19 = tpu.matmul %17, %18, %cst_19 {dimension_numbers = #tpu.dot_dimension_numbers<[1], [0], [0], [1], [0, 0, 1, 1], [], []>} : vector<1x4xf32>, vector<4x8xf32>, vector<1x8xf32> -> vector<1x8xf32>
      %c0_20 = arith.constant 0 : index
      %c0_21 = arith.constant 0 : index
      %20 = vector.load %arg6[%c0_20, %c0_21] : memref<1x8xf32, #tpu.memory_space<vmem>>, vector<1x8xf32>
      %21 = arith.addf %19, %20 : vector<1x8xf32>
      %22 = arith.negf %21 : vector<1x8xf32>
      %23 = math.exp %22 : vector<1x8xf32>
      %cst_22 = arith.constant 1.000000e+00 : f32
      %24 = vector.broadcast %cst_22 : f32 to vector<1x8xf32>
      %25 = arith.addf %24, %23 : vector<1x8xf32>
      %26 = arith.divf %24, %25 : vector<1x8xf32>
      %c0_23 = arith.constant 0 : index
      %c0_24 = arith.constant 0 : index
      %c0_25 = arith.constant 0 : index
      %27 = vector.load %arg7[%c0_23, %c0_24, %c0_25] : memref<1x1x8xf32, #tpu.memory_space<vmem>>, vector<1x1x8xf32>
      %28 = vector.shape_cast %27 : vector<1x1x8xf32> to vector<1x8xf32>
      %29 = vector.shape_cast %26 : vector<1x8xf32> to vector<1x1x8xf32>
      tpu.vector_store %arg7[%c0_23, %c0_24, %c0_25], %29 {strides = array<i32>} : memref<1x1x8xf32, #tpu.memory_space<vmem>>, vector<1x1x8xf32>,
    } else {
    }
    return
  }
  func.func @transform_0(%arg0: i32, %arg1: i32) -> (i32, i32, i32) {
    %c0_i32 = arith.constant 0 : i32
    %c0_i32_0 = arith.constant 0 : i32
    return %arg0, %c0_i32, %arg1 : i32, i32, i32
  }
  func.func @transform_1(%arg0: i32, %arg1: i32) -> (i32, i32) {
    %c0_i32 = arith.constant 0 : i32
    %c0_i32_0 = arith.constant 0 : i32
    %c0_i32_1 = arith.constant 0 : i32
    return %c0_i32, %c0_i32_0 : i32, i32
  }
  func.func @transform_2(%arg0: i32, %arg1: i32) -> (i32, i32) {
    %c0_i32 = arith.constant 0 : i32
    %c0_i32_0 = arith.constant 0 : i32
    %c0_i32_1 = arith.constant 0 : i32
    return %c0_i32, %c0_i32_0 : i32, i32
  }
  func.func @transform_3(%arg0: i32, %arg1: i32) -> (i32, i32) {
    %c0_i32 = arith.constant 0 : i32
    %c0_i32_0 = arith.constant 0 : i32
    %c0_i32_1 = arith.constant 0 : i32
    return %c0_i32, %c0_i32_0 : i32, i32
  }
  func.func @transform_4(%arg0: i32, %arg1: i32) -> (i32, i32) {
    %c0_i32 = arith.constant 0 : i32
    %c0_i32_0 = arith.constant 0 : i32
    %c0_i32_1 = arith.constant 0 : i32
    return %c0_i32, %c0_i32_0 : i32, i32
  }
  func.func @transform_5(%arg0: i32, %arg1: i32) -> (i32, i32, i32) {
    %c0_i32 = arith.constant 0 : i32
    %c0_i32_0 = arith.constant 0 : i32
    %c0_i32_1 = arith.constant 0 : i32
    return %arg0, %c0_i32, %c0_i32_0 : i32, i32, i32
  }
}

</mosaic_0001>

<llo_original>
// kernel: tpu_custom_call.1
$region0: #{tpu_custom_call.1}
  #allocation0 [shape = 'u32[]', space=smem, size = 0x4, offset = 0x4, fixed_abs, tag = 'smem constant byte address 0x4 - core index']
  #allocation1 [shape = 'u32[144,128]{1,0:T(1,128)}', space=vmem, size = 0x12000, scoped, tag = 'internal scratch']
  #allocation2 [shape = 'f32[1,8]{1,0:T(1,128)}', space=vmem, size = 0x200, scoped, tag = 'scratch operand']
  %s0 = inlined_call_operand.hbm [shape: f32[2,8,512], index: 0, kind: input, shape index: {}]
  %s1 = inlined_call_operand.vmem [shape: f32[8,4], index: 1, kind: input, shape index: {}]
  %s2 = inlined_call_operand.vmem [shape: f32[1,4], index: 2, kind: input, shape index: {}]
  %s3 = inlined_call_operand.vmem [shape: f32[4,8], index: 3, kind: input, shape index: {}]
  %s4 = inlined_call_operand.vmem [shape: f32[1,8], index: 4, kind: input, shape index: {}]
  %s5 = inlined_call_operand.hbm [shape: f32[2,1,8], index: 5, kind: output, shape index: {}]
  %s6 = sld [smem:[#allocation0]]
  $region65: #{tpu_custom_call.1} parent=0
    _
  %s8 = ssub.s32 1, %s6
  %s9 = scalar_select 0, %s8, %s6
  $region1: #{tpu_custom_call.1} parent=0
    #allocation3 [shape = 'u8[32768]{0}', space=vmem, size = 0x8000, scoped, tag = 'input window, operand 0']
    #allocation4 [shape = 's32[2]{0}', space=sflag, size = 0x8, scoped, tag = 'scoped memory for tpu_custom_call.1']
    #allocation5 [shape = 's32[2]{0}', space=sflag, size = 0x8, scoped, tag = 'scoped memory for tpu_custom_call.1']
    #allocation6 [shape = 'u8[1024]{0}', space=vmem, size = 0x400, scoped, tag = 'output window, operand 0']
    %10 = vsyncpa [#allocation4], 0
    %s11 = scalar_lea.sflag [#allocation4], 1
    %12 = vsyncpa %s11, 0
    %13 = vsyncpa [#allocation5], 0
    %s14 = scalar_lea.sflag [#allocation5], 1
    %15 = vsyncpa %s14, 0
    loop: start=0, step=1, limit=4
    $region2: #{tpu_custom_call.1} parent=1 // loop_pre_header
      _
    $region3: #{tpu_custom_call.1} parent=1 // loop_header
      %s17 = sphi 0, %s21
      %p18 = scmp.ge.s32.totalorder %s17, 4
      %s24 = sphi 0, %s36
      %s25 = sphi 0, %s32
      %s26 = sphi 0, %s24
      %s27 = sphi 0, %s25
      %s28 = sphi 0, %s26
      %s29 = sphi 0, %s27
      %s41 = sphi 0, %s43
      %s44 = sphi 0, %s41
      %s45 = sphi 0, %s44
      %s61 = sphi 0, %s45
      %s65 = sphi 0, %s65
      %s67 = sphi 0, %s65
      %s68 = sphi 0, %s67
      %s82 = sphi 0, %s68
      %s86 = sphi 0, %s86
      %s88 = sphi 0, %s86
      %s89 = sphi 0, %s88
      %s103 = sphi 0, %s89
      %s107 = sphi 0, %s107
      %s109 = sphi 0, %s107
      %s110 = sphi 0, %s109
      %s124 = sphi 0, %s110
      %s128 = sphi 0, %s128
      %s130 = sphi 0, %s128
      %s131 = sphi 0, %s130
      %s145 = sphi 0, %s131
      %s151 = sphi 0, %s153
      %s154 = sphi 0, %s151
      %s155 = sphi 0, %s154
      %s171 = sphi 0, %s155
    $region4: #{tpu_custom_call.1} parent=1 // loop_header_branch
      %20 = sbr.rel (%p18) target = $region8
    $region5: #{tpu_custom_call.1} parent=1 // loop_body
      %s22 = ssub.s32 %s17, 1
      %s23 = ssub.s32 %s17, 2
      %s30 = sadd.s32 1, %s25
      %p31 = scmp.ge.s32.totalorder %s30, 1
      %s32 = scalar_select %p31, 0, %s30
      %s33 = sadd.s32 1, %s24
      %s34 = scalar_select %p31, %s33, %s24
      %p35 = scmp.ge.s32.totalorder %s34, 2
      %s36 = scalar_select %p35, 0, %s34
      %s37 = ssub.s32 %s24, %s36
      %s38 = ssub.s32 %s25, %s32
      %s39 = sor.u32 %s37, %s38
      %p40 = scmp.eq.s32.totalorder %s39, 0
      %s42 = sadd.s32 %s41, 1
      %s43 = scalar_select %p40, %s41, %s42
      %p46 = pneg %p40
      %p47 = scmp.eq.s32.totalorder %s17, 1
      %p48 = por %p46, %p47
      %p49 = scmp.ne.s32.totalorder %s41, %s44
      %p50 = scmp.eq.s32.totalorder %s17, 0
      %p51 = por %p49, %p50
      %p52 = scmp.ne.s32.totalorder %s41, %s44
      %p53 = scmp.eq.s32.totalorder %s22, 1
      %p54 = por %p52, %p53
      %p55 = scmp.ne.s32.totalorder %s44, %s45
      %p56 = scmp.eq.s32.totalorder %s22, 0
      %p57 = por %p55, %p56
      %p58 = scmp.ne.s32.totalorder %s44, %s45
      %p59 = scmp.eq.s32.totalorder %s23, 1
      %p60 = por %p58, %p59
      %p62 = scmp.ne.s32.totalorder %s45, %s61
      %p63 = scmp.eq.s32.totalorder %s23, 0
      %p64 = por %p62, %p63
      %s66 = sadd.s32 %s65, 1
      %p69 = scmp.eq.s32.totalorder %s17, 1
      %p70 = scmp.ne.s32.totalorder %s65, %s67
      %p71 = scmp.eq.s32.totalorder %s17, 0
      %p72 = por %p70, %p71
      %p73 = scmp.ne.s32.totalorder %s65, %s67
      %p74 = scmp.eq.s32.totalorder %s22, 1
      %p75 = por %p73, %p74
      %p76 = scmp.ne.s32.totalorder %s67, %s68
      %p77 = scmp.eq.s32.totalorder %s22, 0
      %p78 = por %p76, %p77
      %p79 = scmp.ne.s32.totalorder %s67, %s68
      %p80 = scmp.eq.s32.totalorder %s23, 1
      %p81 = por %p79, %p80
      %p83 = scmp.ne.s32.totalorder %s68, %s82
      %p84 = scmp.eq.s32.totalorder %s23, 0
      %p85 = por %p83, %p84
      %s87 = sadd.s32 %s86, 1
      %p90 = scmp.eq.s32.totalorder %s17, 1
      %p91 = scmp.ne.s32.totalorder %s86, %s88
      %p92 = scmp.eq.s32.totalorder %s17, 0
      %p93 = por %p91, %p92
      %p94 = scmp.ne.s32.totalorder %s86, %s88
      %p95 = scmp.eq.s32.totalorder %s22, 1
      %p96 = por %p94, %p95
      %p97 = scmp.ne.s32.totalorder %s88, %s89
      %p98 = scmp.eq.s32.totalorder %s22, 0
      %p99 = por %p97, %p98
      %p100 = scmp.ne.s32.totalorder %s88, %s89
      %p101 = scmp.eq.s32.totalorder %s23, 1
      %p102 = por %p100, %p101
      %p104 = scmp.ne.s32.totalorder %s89, %s103
      %p105 = scmp.eq.s32.totalorder %s23, 0
      %p106 = por %p104, %p105
      %s108 = sadd.s32 %s107, 1
      %p111 = scmp.eq.s32.totalorder %s17, 1
      %p112 = scmp.ne.s32.totalorder %s107, %s109
      %p113 = scmp.eq.s32.totalorder %s17, 0
      %p114 = por %p112, %p113
      %p115 = scmp.ne.s32.totalorder %s107, %s109
      %p116 = scmp.eq.s32.totalorder %s22, 1
      %p117 = por %p115, %p116
      %p118 = scmp.ne.s32.totalorder %s109, %s110
      %p119 = scmp.eq.s32.totalorder %s22, 0
      %p120 = por %p118, %p119
      %p121 = scmp.ne.s32.totalorder %s109, %s110
      %p122 = scmp.eq.s32.totalorder %s23, 1
      %p123 = por %p121, %p122
      %p125 = scmp.ne.s32.totalorder %s110, %s124
      %p126 = scmp.eq.s32.totalorder %s23, 0
      %p127 = por %p125, %p126
      %s129 = sadd.s32 %s128, 1
      %p132 = scmp.eq.s32.totalorder %s17, 1
      %p133 = scmp.ne.s32.totalorder %s128, %s130
      %p134 = scmp.eq.s32.totalorder %s17, 0
      %p135 = por %p133, %p134
      %p136 = scmp.ne.s32.totalorder %s128, %s130
      %p137 = scmp.eq.s32.totalorder %s22, 1
      %p138 = por %p136, %p137
      %p139 = scmp.ne.s32.totalorder %s130, %s131
      %p140 = scmp.eq.s32.totalorder %s22, 0
      %p141 = por %p139, %p140
      %p142 = scmp.ne.s32.totalorder %s130, %s131
      %p143 = scmp.eq.s32.totalorder %s23, 1
      %p144 = por %p142, %p143
      %p146 = scmp.ne.s32.totalorder %s131, %s145
      %p147 = scmp.eq.s32.totalorder %s23, 0
      %p148 = por %p146, %p147
      %s149 = ssub.s32 %s24, %s36
      %p150 = scmp.eq.s32.totalorder %s149, 0
      %s152 = sadd.s32 %s151, 1
      %s153 = scalar_select %p150, %s151, %s152
      %p156 = pneg %p150
      %p157 = scmp.eq.s32.totalorder %s17, 1
      %p158 = por %p156, %p157
      %p159 = scmp.ne.s32.totalorder %s151, %s154
      %p160 = scmp.eq.s32.totalorder %s17, 0
      %p161 = por %p159, %p160
      %p162 = scmp.ne.s32.totalorder %s151, %s154
      %p163 = scmp.eq.s32.totalorder %s22, 1
      %p164 = por %p162, %p163
      %p165 = scmp.ne.s32.totalorder %s154, %s155
      %p166 = scmp.eq.s32.totalorder %s22, 0
      %p167 = por %p165, %p166
      %p168 = scmp.ne.s32.totalorder %s154, %s155
      %p169 = scmp.eq.s32.totalorder %s23, 1
      %p170 = por %p168, %p169
      %p172 = scmp.ne.s32.totalorder %s155, %s171
      %p173 = scmp.eq.s32.totalorder %s23, 0
      %p174 = por %p172, %p173
      %p175 = scmp.le.s32.totalorder 1, %s17
      %p176 = scmp.lt.s32.totalorder %s17, 3
      %p177 = pnand %p175, %p176
      %p178 = pneg %p177
      // Predicated region
      $region9: #{tpu_custom_call.1} parent=5 // pred_check
        _
      $region10: #{tpu_custom_call.1} parent=5 // pred_check_branch
        %180 = sbr.rel (%p177) target = $region12
      $region11: #{tpu_custom_call.1} parent=5 // pred_region
        %s181 = ssub.s32 %s17, 1
        // Predicated region
        $region13: #{tpu_custom_call.1} parent=11 // pred_check
          %p182 = pneg %p78
        $region14: #{tpu_custom_call.1} parent=11 // pred_check_branch
          %184 = sbr.rel (%p182) target = $region16
        $region15: #{tpu_custom_call.1} parent=11 // pred_region
          _
        $region16: #{tpu_custom_call.1} parent=11 // pred_fallthru
          _
        // Predicated region
        $region17: #{tpu_custom_call.1} parent=11 // pred_check
          %p185 = pneg %p99
        $region18: #{tpu_custom_call.1} parent=11 // pred_check_branch
          %187 = sbr.rel (%p185) target = $region20
        $region19: #{tpu_custom_call.1} parent=11 // pred_region
          _
        $region20: #{tpu_custom_call.1} parent=11 // pred_fallthru
          _
        // Predicated region
        $region21: #{tpu_custom_call.1} parent=11 // pred_check
          %p188 = pneg %p120
        $region22: #{tpu_custom_call.1} parent=11 // pred_check_branch
          %190 = sbr.rel (%p188) target = $region24
        $region23: #{tpu_custom_call.1} parent=11 // pred_region
          _
        $region24: #{tpu_custom_call.1} parent=11 // pred_fallthru
          _
        // Predicated region
        $region25: #{tpu_custom_call.1} parent=11 // pred_check
          %p191 = pneg %p141
        $region26: #{tpu_custom_call.1} parent=11 // pred_check_branch
          %193 = sbr.rel (%p191) target = $region28
        $region27: #{tpu_custom_call.1} parent=11 // pred_region
          _
        $region28: #{tpu_custom_call.1} parent=11 // pred_fallthru
          _
      $region12: #{tpu_custom_call.1} parent=5 // pred_fallthru
        _
      %p194 = scmp.lt.s32.totalorder %s17, 2
      // Predicated region
      $region29: #{tpu_custom_call.1} parent=5 // pred_check
        %p195 = pneg %p194
      $region30: #{tpu_custom_call.1} parent=5 // pred_check_branch
        %197 = sbr.rel (%p195) target = $region32
      $region31: #{tpu_custom_call.1} parent=5 // pred_region
        // Predicated region
        $region33: #{tpu_custom_call.1} parent=31 // pred_check
          %p198 = pneg %p51
        $region34: #{tpu_custom_call.1} parent=31 // pred_check_branch
          %200 = sbr.rel (%p198) target = $region36
        $region35: #{tpu_custom_call.1} parent=31 // pred_region
          %s201 = sand.u32 %s41, 1
          %s202 = scalar_lea.sflag [#allocation4], %s201
          %s203 = sand.u32 %s41, 1
          %s204 = smul.addr %s203, 32
          %s205 = scalar_lea.vmem [#allocation3], %s204
          %s206 = smul.u32 4, %s25
          %s208 = ssub.s32 512, 512
          %209 = vsyncadd %s202, %s208
          %s210 = smul.addr %s24, 4
          %s211 = sadd.s32 %s206, %s210
          %s212 = smul.addr %s211, 128
          %s213 = scalar_lea.hbm %s0, %s212
          %s215 = sshll.u32 %s205, 4
          %s216 = int_to_ptr.vmem [resolvable:$true] %s215
          %218 = dma.hbm_to_vmem [thread:$0]  %s213, 512, %s216, %s202
        $region36: #{tpu_custom_call.1} parent=31 // pred_fallthru
          _
      $region32: #{tpu_custom_call.1} parent=5 // pred_fallthru
        _
      %p219 = scmp.le.s32.totalorder 1, %s17
      %p220 = scmp.lt.s32.totalorder %s17, 3
      %p221 = pnand %p219, %p220
      %p222 = pneg %p221
      // Predicated region
      $region37: #{tpu_custom_call.1} parent=5 // pred_check
        _
      $region38: #{tpu_custom_call.1} parent=5 // pred_check_branch
        %224 = sbr.rel (%p221) target = $region40
      $region39: #{tpu_custom_call.1} parent=5 // pred_region
        %s225 = ssub.s32 %s17, 1
        %s226 = sand.u32 %s44, 1
        %s227 = scalar_lea.sflag [#allocation4], %s226
        %s228 = sand.u32 %s44, 1
        %s229 = smul.addr %s228, 32
        %s230 = scalar_lea.vmem [#allocation3], %s229
        // Predicated region
        $region41: #{tpu_custom_call.1} parent=39 // pred_check
          %p231 = pneg %p57
        $region42: #{tpu_custom_call.1} parent=39 // pred_check_branch
          %233 = sbr.rel (%p231) target = $region44
        $region43: #{tpu_custom_call.1} parent=39 // pred_region
          %234 = dma.done %s227, 512
        $region44: #{tpu_custom_call.1} parent=39 // pred_fallthru
          _
        %s235 = sand.u32 %s44, 1
        %s236 = scalar_lea.sflag [#allocation4], %s235
        %s237 = sand.u32 %s44, 1
        %s238 = smul.addr %s237, 32
        %s239 = scalar_lea.vmem [#allocation3], %s238
        %p240 = pneg %p57
        %p241 = pneg %p54
        %p242 = pneg %p78
        %p243 = pneg %p75
        %p244 = pneg %p99
        %p245 = pneg %p96
        %p246 = pneg %p120
        %p247 = pneg %p117
        %p248 = pneg %p141
        %p249 = pneg %p138
        %p250 = pneg %p167
        %p251 = pneg %p164
        %s252 = sand.u32 %s154, 1
        %s253 = scalar_lea.sflag [#allocation5], %s252
        %s254 = sand.u32 %s154, 1
        %s255 = scalar_lea.vmem [#allocation6], %s254
        %s256 = smul.u32 4, %s27
        %p257 = scmp.eq.s32.totalorder %s27, 0
        // Predicated region
        $region45: #{tpu_custom_call.1} parent=39 // pred_check
          %p258 = pneg %p257
        $region46: #{tpu_custom_call.1} parent=39 // pred_check_branch
          %260 = sbr.rel (%p258) target = $region48
        $region47: #{tpu_custom_call.1} parent=39 // pred_region
          %vm261 = vcmask 57344
          %262 = vst.msk [vmem:[#allocation2] sm:$0x1] %vm261, 0.0
        $region48: #{tpu_custom_call.1} parent=39 // pred_fallthru
          _
        %v263 = vld [vmem:[%s230] sm:$0xff]
        %v264 = vld [vmem:[%s230 + $0x8] sm:$0xff]
        %v265 = vld [vmem:[%s230 + $0x10] sm:$0xff]
        %v266 = vld [vmem:[%s230 + $0x18] sm:$0xff]
        %v267 = vld [vmem:[#allocation2] sm:$0x1]
        %v268 = vadd.f32 %v263, %v264
        %v269 = vadd.f32 %v268, %v265
        %v270 = vadd.f32 %v269, %v266
        %271 = vadd.xlane.f32.xlu0 %v270
        %v272 = vpop.xlane.xlu0 %271
        %v274 = vlaneseq
        %v275 = vshrl.u32 %v274, 7
        %v276 = vsub.s32 0, %v275
        %v277 = vrot.slane %v272, %v276
        %v278 = vlaneseq
        %v279 = vshrl.u32 %v278, 7
        %v280 = vsub.s32 1, %v279
        %v281 = vrot.slane %v272, %v280
        %v282 = vlaneseq
        %v283 = vshrl.u32 %v282, 7
        %v284 = vsub.s32 2, %v283
        %v285 = vrot.slane %v272, %v284
        %v286 = vlaneseq
        %v287 = vshrl.u32 %v286, 7
        %v288 = vsub.s32 3, %v287
        %v289 = vrot.slane %v272, %v288
        %v290 = vlaneseq
        %v291 = vshrl.u32 %v290, 7
        %v292 = vsub.s32 4, %v291
        %v293 = vrot.slane %v272, %v292
        %v294 = vlaneseq
        %v295 = vshrl.u32 %v294, 7
        %v296 = vsub.s32 5, %v295
        %v297 = vrot.slane %v272, %v296
        %v298 = vlaneseq
        %v299 = vshrl.u32 %v298, 7
        %v300 = vsub.s32 6, %v299
        %v301 = vrot.slane %v272, %v300
        %v302 = vlaneseq
        %v303 = vshrl.u32 %v302, 7
        %v304 = vsub.s32 7, %v303
        %v305 = vrot.slane %v272, %v304
        %v306 = vcombine.low %v277, %v281
        %v307 = vcombine.low %v285, %v289
        %v308 = vcombine.low %v293, %v297
        %v309 = vcombine.low %v301, %v305
        %v311 = vunpack.c.l.s4 1966171168
        %v312 = vunpack.c.0.s8 %v311
        %v313 = vlaneseq
        %v314 = vshrl.u32 %v313, 7
        %v315 = vsub.s32 %v312, %v314
        %v316 = vrot.slane %v306, %v315
        %v318 = vunpack.c.l.s4 1966171168
        %v319 = vunpack.c.0.s8 %v318
        %v320 = vlaneseq
        %v321 = vshrl.u32 %v320, 7
        %v322 = vsub.s32 %v319, %v321
        %v323 = vrot.slane %v307, %v322
        %v325 = vunpack.c.l.s4 1966171168
        %v326 = vunpack.c.0.s8 %v325
        %v327 = vlaneseq
        %v328 = vshrl.u32 %v327, 7
        %v329 = vsub.s32 %v326, %v328
        %v330 = vrot.slane %v308, %v329
        %v332 = vunpack.c.l.s4 1966171168
        %v333 = vunpack.c.0.s8 %v332
        %v334 = vlaneseq
        %v335 = vshrl.u32 %v334, 7
        %v336 = vsub.s32 %v333, %v335
        %v337 = vrot.slane %v309, %v336
        %v338 = vcombine.low %v316, %v323
        %v339 = vcombine.low %v330, %v337
        %v341 = vunpack.c.l.s4 1966171168
        %v342 = vunpack.c.0.s8 %v341
        %v343 = vlaneseq
        %v344 = vshrl.u32 %v343, 7
        %v345 = vsub.s32 %v342, %v344
        %v346 = vrot.slane %v338, %v345
        %v348 = vunpack.c.l.s4 1966171168
        %v349 = vunpack.c.0.s8 %v348
        %v350 = vlaneseq
        %v351 = vshrl.u32 %v350, 7
        %v352 = vsub.s32 %v349, %v351
        %v353 = vrot.slane %v339, %v352
        %v354 = vcombine.low %v346, %v353
        %355 = vset.pattern.permute.xlu0 0
        %356 = vperm.xlu0 %355, %v354
        %v357 = vpop.permute.xlu0 %356
        %v358 = vlaneseq
        %v359 = vand.u32 %v358, 127
        %v360 = vlaneseq
        %v361 = vshrl.u32 %v360, 7
        %v362 = vsub.s32 %v359, %v361
        %v363 = vrot.slane %v357, %v362
        %v365 = vunpack.c.l.s4 1966171168
        %v366 = vunpack.c.0.s8 %v365
        %v367 = vlaneseq
        %v368 = vshrl.u32 %v367, 7
        %v369 = vsub.s32 %v366, %v368
        %v370 = vrot.slane %v363, %v369
        %v372 = vunpack.c.l.s4 1966171168
        %v373 = vunpack.c.0.s8 %v372
        %v374 = vlaneseq
        %v375 = vshrl.u32 %v374, 7
        %v376 = vsub.s32 %v373, %v375
        %v377 = vrot.slane %v370, %v376
        %v379 = vadd.f32 %v267, %v377
        %vm380 = vcmask 57344
        %381 = vst.msk [vmem:[#allocation2] sm:$0x1] %vm380, %v379
        // Predicated region
        $region49: #{tpu_custom_call.1} parent=39 // pred_check
          %p382 = pneg %p257
        $region50: #{tpu_custom_call.1} parent=39 // pred_check_branch
          %384 = sbr.rel (%p382) target = $region52
        $region51: #{tpu_custom_call.1} parent=39 // pred_region
          %v385 = vld [vmem:[#allocation2] sm:$0x1]
          %v386 = vld [vmem:[%s1] sm:$0xff]
          %v387 = vld [vmem:[%s2] sm:$0x1]
          %vm388 = vcmask 64512
          %v390 = vsel %vm388, %v385, 0
          %392 = vmatprep.subr.mxu0 0.0
          %393 = vmatpush1.msra.mxu0 %v386
          %394 = vmatprep.subr.mxu0 0.0
          %395 = vmatpush1.msra.mxu0 0.0
          %396 = vmatprep.subr.mxu0 0.0
          %397 = vmatpush1.msra.mxu0 0.0
          %398 = vmatprep.subr.mxu0 0.0
          %399 = vmatpush1.msra.mxu0 0.0
          %400 = vmatprep.subr.mxu0 0.0
          %401 = vmatpush1.msra.mxu0 0.0
          %402 = vmatprep.subr.mxu0 0.0
          %403 = vmatpush1.msra.mxu0 0.0
          %404 = vmatprep.subr.mxu0 0.0
          %405 = vmatpush1.msra.mxu0 0.0
          %406 = vmatprep.subr.mxu0 0.0
          %407 = vmatpush1.msra.mxu0 0.0
          %408 = vmatprep.subr.mxu0 0.0
          %409 = vmatpush1.msra.mxu0 0.0
          %410 = vmatprep.subr.mxu0 0.0
          %411 = vmatpush1.msra.mxu0 0.0
          %412 = vmatprep.subr.mxu0 0.0
          %413 = vmatpush1.msra.mxu0 0.0
          %414 = vmatprep.subr.mxu0 0.0
          %415 = vmatpush1.msra.mxu0 0.0
          %416 = vmatprep.subr.mxu0 0.0
          %417 = vmatpush1.msra.mxu0 0.0
          %418 = vmatprep.subr.mxu0 0.0
          %419 = vmatpush1.msra.mxu0 0.0
          %420 = vmatprep.subr.mxu0 0.0
          %421 = vmatpush1.msra.mxu0 0.0
          %422 = vmatprep.subr.mxu0 0.0
          %423 = vmatpush1.msra.mxu0 0.0
          %424 = vmatprep.subr.mxu0 0.0
          %425 = vmatpush1.msra.mxu0 0.0
          %426 = vmatprep.subr.mxu0 0.0
          %427 = vmatpush1.msra.mxu0 0.0
          %428 = vmatprep.subr.mxu0 0.0
          %429 = vmatpush1.msra.mxu0 0.0
          %430 = vmatprep.subr.mxu0 0.0
          %431 = vmatpush1.msra.mxu0 0.0
          %432 = vmatprep.subr.mxu0 0.0
          %433 = vmatpush1.msra.mxu0 0.0
          %434 = vmatprep.subr.mxu0 0.0
          %435 = vmatpush1.msra.mxu0 0.0
          %436 = vmatprep.subr.mxu0 0.0
          %437 = vmatpush1.msra.mxu0 0.0
          %438 = vmatprep.subr.mxu0 0.0
          %439 = vmatpush1.msra.mxu0 0.0
          %440 = vmatprep.subr.mxu0 0.0
          %441 = vmatpush1.msra.mxu0 0.0
          %442 = vmatprep.subr.mxu0 0.0
          %443 = vmatpush1.msra.mxu0 0.0
          %444 = vmatprep.subr.mxu0 0.0
          %445 = vmatpush1.msra.mxu0 0.0
          %446 = vmatprep.subr.mxu0 0.0
          %447 = vmatpush1.msra.mxu0 0.0
          %448 = vmatprep.subr.mxu0 0.0
          %449 = vmatpush1.msra.mxu0 0.0
          %450 = vmatprep.subr.mxu0 0.0
          %451 = vmatpush1.msra.mxu0 0.0
          %452 = vmatprep.subr.mxu0 0.0
          %453 = vmatpush1.msra.mxu0 0.0
          %454 = vmatprep.subr.mxu0 0.0
          %455 = vmatpush1.msra.mxu0 0.0
          %456 = vmatprep.mubr.f32.mxu0 0.0
          %457 = vmatmul.mubr.f32.gmra.mrb[0].mxu0 %v390
          %v458 = vpop.f32.mrb[0].mxu0
          %v459 = vadd.f32 %v387, %v458
          %v460 = vpop.f32.mrb[0].mxu0
          %461 = vdwg.mxu0
          %v462 = vmax.f32 %v459, 0.0
          %v463 = vld [vmem:[%s3] sm:$0xf]
          %v464 = vld [vmem:[%s4] sm:$0x1]
          %vm465 = vcmask 31744
          %v467 = vsel %vm465, %v462, 0
          %vm469 = vcmask 1043456
          %v471 = vsel %vm469, %v463, 0
          %473 = vmatprep.subr.mxu0 0.0
          %474 = vmatpush1.msra.mxu0 %v471
          %475 = vmatprep.subr.mxu0 0.0
          %476 = vmatpush1.msra.mxu0 0.0
          %477 = vmatprep.subr.mxu0 0.0
          %478 = vmatpush1.msra.mxu0 0.0
          %479 = vmatprep.subr.mxu0 0.0
          %480 = vmatpush1.msra.mxu0 0.0
          %481 = vmatprep.subr.mxu0 0.0
          %482 = vmatpush1.msra.mxu0 0.0
          %483 = vmatprep.subr.mxu0 0.0
          %484 = vmatpush1.msra.mxu0 0.0
          %485 = vmatprep.subr.mxu0 0.0
          %486 = vmatpush1.msra.mxu0 0.0
          %487 = vmatprep.subr.mxu0 0.0
          %488 = vmatpush1.msra.mxu0 0.0
          %489 = vmatprep.subr.mxu0 0.0
          %490 = vmatpush1.msra.mxu0 0.0
          %491 = vmatprep.subr.mxu0 0.0
          %492 = vmatpush1.msra.mxu0 0.0
          %493 = vmatprep.subr.mxu0 0.0
          %494 = vmatpush1.msra.mxu0 0.0
          %495 = vmatprep.subr.mxu0 0.0
          %496 = vmatpush1.msra.mxu0 0.0
          %497 = vmatprep.subr.mxu0 0.0
          %498 = vmatpush1.msra.mxu0 0.0
          %499 = vmatprep.subr.mxu0 0.0
          %500 = vmatpush1.msra.mxu0 0.0
          %501 = vmatprep.subr.mxu0 0.0
          %502 = vmatpush1.msra.mxu0 0.0
          %503 = vmatprep.subr.mxu0 0.0
          %504 = vmatpush1.msra.mxu0 0.0
          %505 = vmatprep.subr.mxu0 0.0
          %506 = vmatpush1.msra.mxu0 0.0
          %507 = vmatprep.subr.mxu0 0.0
          %508 = vmatpush1.msra.mxu0 0.0
          %509 = vmatprep.subr.mxu0 0.0
          %510 = vmatpush1.msra.mxu0 0.0
          %511 = vmatprep.subr.mxu0 0.0
          %512 = vmatpush1.msra.mxu0 0.0
          %513 = vmatprep.subr.mxu0 0.0
          %514 = vmatpush1.msra.mxu0 0.0
          %515 = vmatprep.subr.mxu0 0.0
          %516 = vmatpush1.msra.mxu0 0.0
          %517 = vmatprep.subr.mxu0 0.0
          %518 = vmatpush1.msra.mxu0 0.0
          %519 = vmatprep.subr.mxu0 0.0
          %520 = vmatpush1.msra.mxu0 0.0
          %521 = vmatprep.subr.mxu0 0.0
          %522 = vmatpush1.msra.mxu0 0.0
          %523 = vmatprep.subr.mxu0 0.0
          %524 = vmatpush1.msra.mxu0 0.0
          %525 = vmatprep.subr.mxu0 0.0
          %526 = vmatpush1.msra.mxu0 0.0
          %527 = vmatprep.subr.mxu0 0.0
          %528 = vmatpush1.msra.mxu0 0.0
          %529 = vmatprep.subr.mxu0 0.0
          %530 = vmatpush1.msra.mxu0 0.0
          %531 = vmatprep.subr.mxu0 0.0
          %532 = vmatpush1.msra.mxu0 0.0
          %533 = vmatprep.subr.mxu0 0.0
          %534 = vmatpush1.msra.mxu0 0.0
          %535 = vmatprep.subr.mxu0 0.0
          %536 = vmatpush1.msra.mxu0 0.0
          %537 = vmatprep.mubr.f32.mxu0 0.0
          %538 = vmatmul.mubr.f32.gmra.mrb[0].mxu0 %v467
          %v539 = vpop.f32.mrb[0].mxu0
          %v540 = vadd.f32 %v464, %v539
          %v541 = vpop.f32.mrb[0].mxu0
          %542 = vdwg.mxu0
          %v543 = vxor.u32 %v540, 2147483648
          %v544 = vmul.f32 %v543, 1.442695
          %v545 = vpow.pop %v544
          %v546 = vadd.f32 %v545, 1.0
          %v547 = vrcp.pop %v546
          %v548 = vmul.f32 1.0, %v547
          %549 = vst.msk [vmem:[%s255] sm:$0x1] %vm380, %v548
        $region52: #{tpu_custom_call.1} parent=39 // pred_fallthru
          _
        %s550 = sand.u32 %s154, 1
        %s551 = scalar_lea.sflag [#allocation5], %s550
        %s552 = sand.u32 %s154, 1
        %s553 = scalar_lea.vmem [#allocation6], %s552
        // Predicated region
        $region53: #{tpu_custom_call.1} parent=39 // pred_check
          %p554 = pneg %p164
        $region54: #{tpu_custom_call.1} parent=39 // pred_check_branch
          %556 = sbr.rel (%p554) target = $region56
        $region55: #{tpu_custom_call.1} parent=39 // pred_region
          %s558 = ssub.s32 16, 16
          %559 = vsyncadd %s551, %s558
          %s560 = smul.addr %s26, 16
          %s561 = scalar_lea.hbm %s5, %s560
          %s563 = sshll.u32 %s553, 4
          %s564 = int_to_ptr.vmem [resolvable:$true] %s563
          %566 = dma.vmem_to_hbm [thread:$0]  %s564, 16, %s561, %s551
        $region56: #{tpu_custom_call.1} parent=39 // pred_fallthru
          _
      $region40: #{tpu_custom_call.1} parent=5 // pred_fallthru
        _
      %p567 = scmp.le.s32.totalorder 2, %s17
      // Predicated region
      $region57: #{tpu_custom_call.1} parent=5 // pred_check
        %p568 = pneg %p567
      $region58: #{tpu_custom_call.1} parent=5 // pred_check_branch
        %570 = sbr.rel (%p568) target = $region60
      $region59: #{tpu_custom_call.1} parent=5 // pred_region
        %s571 = ssub.s32 %s17, 2
        // Predicated region
        $region61: #{tpu_custom_call.1} parent=59 // pred_check
          %p572 = pneg %p170
        $region62: #{tpu_custom_call.1} parent=59 // pred_check_branch
          %574 = sbr.rel (%p572) target = $region64
        $region63: #{tpu_custom_call.1} parent=59 // pred_region
          %s575 = sand.u32 %s155, 1
          %s576 = scalar_lea.sflag [#allocation5], %s575
          %s577 = sand.u32 %s155, 1
          %s578 = scalar_lea.vmem [#allocation6], %s577
          %579 = dma.done %s576, 16
        $region64: #{tpu_custom_call.1} parent=59 // pred_fallthru
          _
      $region60: #{tpu_custom_call.1} parent=5 // pred_fallthru
        _
    $region6: #{tpu_custom_call.1} parent=1 // loop_footer
      %s21 = sadd.s32 1, %s17
    $region7: #{tpu_custom_call.1} parent=1 // loop_footer_branch
      %16 = sbr.rel target = $region3
    $region8: #{tpu_custom_call.1} parent=1 // loop_exit
      _
    %580 = vsyncpa [#allocation4], 1
    %s581 = scalar_lea.sflag [#allocation4], 1
    %582 = vsyncpa %s581, 1
    %583 = vsyncpa [#allocation5], 1
    %s584 = scalar_lea.sflag [#allocation5], 1
    %585 = vsyncpa %s584, 1

</llo_original>
